<compile_context>
chip_gen: v7x
topology: tpu7x:2x2x1
jax: 0.10.0
libtpu: 0.0.40
codegen_flags: <defaults>
</compile_context>

<pallas_src>
import functools

import jax
import jax.numpy as jnp
from jax.experimental import pallas as pl
from jax.experimental.pallas import tpu as pltpu

EPS = 1e-5                      # torch.nn.LayerNorm default
_INV_SQRT2 = 0.7071067811865476
_SQRT_2_OVER_PI = 0.7978845608028654


def _layer_kernel(x_ref, w_ref, b_ref, o_ref, *, approx_gelu):
    # x_ref: (TM, H) block of rows; w_ref/b_ref: (1, H) f32 affine params.
    x = x_ref[...].astype(jnp.float32)
    w = w_ref[...]          # f32, broadcast by the VPU against (TM, H)
    b = b_ref[...]

    # Single-pass moments over the hidden axis (biased variance, like torch).
    mean = jnp.mean(x, axis=-1, keepdims=True)
    ex2 = jnp.mean(x * x, axis=-1, keepdims=True)
    var = jnp.maximum(ex2 - mean * mean, 0.0)
    xn = (x - mean) * jax.lax.rsqrt(var + EPS)

    y = xn * w + b

    if approx_gelu:
        # tanh-approx GELU: the transcendental runs on the otherwise-idle EUP.
        g = 0.5 * y * (1.0 + jnp.tanh(_SQRT_2_OVER_PI * (y + 0.044715 * y * y * y)))
    else:
        # Exact GELU (erf form), matching torch.nn.functional.gelu default.
        g = 0.5 * y * (1.0 + jax.lax.erf(y * _INV_SQRT2))

    o_ref[...] = g.astype(o_ref.dtype)


def _tpu_vmem_capacity_bytes():
    try:
        return int(pltpu.get_tpu_info().vmem_capacity_bytes)
    except Exception:
        return 64 * 1024 * 1024  # conservative: v7x per-TC VMEM


def _pick_row_tile(rows, H, dtype, budget_bytes, min_steps=8):
    """Largest sublane-aligned row tile (<=1024) that fits the VMEM budget and
    still leaves >= min_steps grid steps for pipelining / megacore sharding."""
    itemsize = jnp.dtype(dtype).itemsize
    # Sub-32-bit dtypes pack along sublanes: f32 -> 8, bf16 -> 16, 8-bit -> 32.
    sublane = {1: 32, 2: 16}.get(itemsize, 8)

    # Per row of tile: double-buffered in + out blocks (4 * itemsize bytes)
    # plus ~3 live f32 temporaries (x, xn/y, g) -> +12 bytes.
    per_row_bytes = H * (4 * itemsize + 12)
    tm = budget_bytes // max(per_row_bytes, 1)
    tm = min(int(tm), 1024)

    # Keep the grid at least ~min_steps deep so double-buffering overlaps and
    # v7x's two TensorCores both get work.
    steps_cap = max(rows // min_steps, sublane)
    tm = min(tm, steps_cap)

    tm = max(sublane, (tm // sublane) * sublane)
    # No point tiling beyond the (sublane-rounded) total row count.
    tm = min(tm, pl.cdiv(rows, sublane) * sublane)
    return tm, sublane


def layer_forward(x, weight, bias, *, row_tile=None, approx_gelu=False):
    """out = gelu(layernorm(x; weight, bias)), x: (B, S, H)."""
    B, S, H = x.shape
    rows = B * S

    # Generation-aware VMEM budgeting (v7x: 64 MiB/TC; v5e/v6e: 128 MiB).
    vmem_cap = _tpu_vmem_capacity_bytes()
    vmem_limit = min((vmem_cap * 3) // 4, 96 * 1024 * 1024)
    tile_budget = (vmem_limit * 4) // 5  # leave ~20% slack under the scoped limit

    auto_tile, sublane = _pick_row_tile(rows, H, x.dtype, tile_budget)
    if row_tile is None:
        row_tile = auto_tile
    else:
        assert row_tile % sublane == 0, "row_tile must match sublane packing"

    grid = pl.cdiv(rows, row_tile)  # last block may be partial; no pad/slice pass

    x2 = x.reshape(rows, H)
    w2 = weight.astype(jnp.float32).reshape(1, H)
    b2 = bias.astype(jnp.float32).reshape(1, H)

    kernel = functools.partial(_layer_kernel, approx_gelu=approx_gelu)

    out2 = pl.pallas_call(
        kernel,
        out_shape=jax.ShapeDtypeStruct((rows, H), x.dtype),
        grid_spec=pltpu.PrefetchScalarGridSpec(
            num_scalar_prefetch=0,
            grid=(grid,),
            in_specs=[
                pl.BlockSpec((row_tile, H), lambda i: (i, 0)),
                pl.BlockSpec((1, H), lambda i: (0, 0)),
                pl.BlockSpec((1, H), lambda i: (0, 0)),
            ],
            out_specs=pl.BlockSpec((row_tile, H), lambda i: (i, 0)),
        ),
        compiler_params=pltpu.CompilerParams(
            dimension_semantics=("parallel",),   # v7x: shard rows over 2 TCs
            vmem_limit_bytes=vmem_limit,
        ),
    )(x2, w2, b2)

    return out2.reshape(B, S, H)


def _reference(x, weight, bias, *, approx_gelu=False):
    xf = x.astype(jnp.float32)
    mean = jnp.mean(xf, axis=-1, keepdims=True)
    var = jnp.mean((xf - mean) ** 2, axis=-1, keepdims=True)
    xn = (xf - mean) * jax.lax.rsqrt(var + EPS)
    y = xn * weight.astype(jnp.float32) + bias.astype(jnp.float32)
    if approx_gelu:
        g = jax.nn.gelu(y, approximate=True)
    else:
        g = 0.5 * y * (1.0 + jax.lax.erf(y * _INV_SQRT2))
    return g.astype(x.dtype)


if __name__ == "__main__":
    key = jax.random.PRNGKey(0)
    kx, kw, kb, kx2 = jax.random.split(key, 4)

    # Small, lane-dense (H = 128) shape; rows (18) is NOT a tile multiple, which
    # exercises the partial-last-block path (no wrapper pad/slice anymore).
    B, S, H = 2, 9, 128
    x = jax.random.normal(kx, (B, S, H), dtype=jnp.float32)
    weight = 1.0 + 0.05 * jax.random.normal(kw, (H,), dtype=jnp.float32)
    bias = 0.05 * jax.random.normal(kb, (H,), dtype=jnp.float32)

    out = layer_forward(x, weight, bias)
    out = jax.block_until_ready(out)
    ref = _reference(x, weight, bias)
    assert out.shape == (B, S, H)
    assert jnp.max(jnp.abs(out - ref)) < 5e-5, "mismatch vs reference (exact gelu)"

    # Multi-block grid with a partial tail block and an explicit row_tile.
    B2, S2 = 2, 20  # rows = 40, row_tile = 16 -> grid of 3, last block partial
    x_b = jax.random.normal(kx2, (B2, S2, H), dtype=jnp.float32)
    out_b = layer_forward(x_b, weight, bias, row_tile=16)
    out_b = jax.block_until_ready(out_b)
    ref_b = _reference(x_b, weight, bias)
    assert out_b.shape == (B2, S2, H)
    assert jnp.max(jnp.abs(out_b - ref_b)) < 5e-5, "mismatch vs reference (multi block)"

    # Optional EUP (tanh-approx) GELU path for VALU-bound v6e/v7x.
    out_a = layer_forward(x, weight, bias, approx_gelu=True)
    out_a = jax.block_until_ready(out_a)
    ref_a = _reference(x, weight, bias, approx_gelu=True)
    assert jnp.max(jnp.abs(out_a - ref_a)) < 1e-4, "mismatch vs reference (approx gelu)"

    print("KERNEL_OK")
</pallas_src>

<mosaic_0001>
module attributes {stable_mosaic.version = 11 : i64} {
  func.func @_layer_kernel(%arg0: i32, %arg1: memref<8x128xf32, #tpu.memory_space<vmem>>, %arg2: memref<1x128xf32, #tpu.memory_space<vmem>>, %arg3: memref<1x128xf32, #tpu.memory_space<vmem>>, %arg4: memref<8x128xf32, #tpu.memory_space<vmem>>) attributes {dimension_semantics = [#tpu.dimension_semantics<parallel>], iteration_bounds = array<i64: 3>, scalar_prefetch = 0 : i64, scratch_operands = 0 : i64, tpu.core_type = #tpu.core_type<tc>, window_params = [{transform_indices = @transform_0, window_bounds = array<i64: 8, 128>}, {pipeline_mode = #tpu.pipeline_mode<synchronous>, transform_indices = @transform_1, window_bounds = array<i64: 1, 128>}, {pipeline_mode = #tpu.pipeline_mode<synchronous>, transform_indices = @transform_2, window_bounds = array<i64: 1, 128>}, {transform_indices = @transform_3, window_bounds = array<i64: 8, 128>}]} {
    %c0 = arith.constant 0 : index
    %c0_0 = arith.constant 0 : index
    %0 = vector.load %arg1[%c0, %c0_0] : memref<8x128xf32, #tpu.memory_space<vmem>>, vector<8x128xf32>
    %c0_1 = arith.constant 0 : index
    %c0_2 = arith.constant 0 : index
    %1 = vector.load %arg2[%c0_1, %c0_2] : memref<1x128xf32, #tpu.memory_space<vmem>>, vector<1x128xf32>
    %c0_3 = arith.constant 0 : index
    %c0_4 = arith.constant 0 : index
    %2 = vector.load %arg3[%c0_3, %c0_4] : memref<1x128xf32, #tpu.memory_space<vmem>>, vector<1x128xf32>
    %cst = arith.constant dense<0.000000e+00> : vector<8xf32>
    %3 = vector.multi_reduction <add>, %0, %cst [1] : vector<8x128xf32> to vector<8xf32>
    %4 = vector.shape_cast %3 : vector<8xf32> to vector<8x1xf32>
    %cst_5 = arith.constant 1.280000e+02 : f32
    %5 = vector.broadcast %cst_5 : f32 to vector<8x1xf32>
    %6 = arith.divf %4, %5 : vector<8x1xf32>
    %7 = arith.mulf %0, %0 : vector<8x128xf32>
    %cst_6 = arith.constant dense<0.000000e+00> : vector<8xf32>
    %8 = vector.multi_reduction <add>, %7, %cst_6 [1] : vector<8x128xf32> to vector<8xf32>
    %9 = vector.shape_cast %8 : vector<8xf32> to vector<8x1xf32>
    %cst_7 = arith.constant 1.280000e+02 : f32
    %10 = vector.broadcast %cst_7 : f32 to vector<8x1xf32>
    %11 = arith.divf %9, %10 : vector<8x1xf32>
    %12 = arith.mulf %6, %6 : vector<8x1xf32>
    %13 = arith.subf %11, %12 : vector<8x1xf32>
    %cst_8 = arith.constant 0.000000e+00 : f32
    %14 = vector.broadcast %cst_8 : f32 to vector<8x1xf32>
    %15 = arith.maximumf %13, %14 : vector<8x1xf32>
    %16 = vector.broadcast %6 : vector<8x1xf32> to vector<8x128xf32>
    %17 = arith.subf %0, %16 : vector<8x128xf32>
    %cst_9 = arith.constant 9.99999974E-6 : f32
    %18 = vector.broadcast %cst_9 : f32 to vector<8x1xf32>
    %19 = arith.addf %15, %18 : vector<8x1xf32>
    %20 = math.rsqrt %19 : vector<8x1xf32>
    %21 = vector.broadcast %20 : vector<8x1xf32> to vector<8x128xf32>
    %22 = arith.mulf %17, %21 : vector<8x128xf32>
    %23 = vector.broadcast %1 : vector<1x128xf32> to vector<8x128xf32>
    %24 = arith.mulf %22, %23 : vector<8x128xf32>
    %25 = vector.broadcast %2 : vector<1x128xf32> to vector<8x128xf32>
    %26 = arith.addf %24, %25 : vector<8x128xf32>
    %cst_10 = arith.constant 5.000000e-01 : f32
    %27 = vector.broadcast %cst_10 : f32 to vector<8x128xf32>
    %28 = arith.mulf %27, %26 : vector<8x128xf32>
    %cst_11 = arith.constant 0.707106769 : f32
    %29 = vector.broadcast %cst_11 : f32 to vector<8x128xf32>
    %30 = arith.mulf %26, %29 : vector<8x128xf32>
    %31 = math.erf %30 : vector<8x128xf32>
    %cst_12 = arith.constant 1.000000e+00 : f32
    %32 = vector.broadcast %cst_12 : f32 to vector<8x128xf32>
    %33 = arith.addf %32, %31 : vector<8x128xf32>
    %34 = arith.mulf %28, %33 : vector<8x128xf32>
    %c0_13 = arith.constant 0 : index
    %c0_14 = arith.constant 0 : index
    %35 = vector.load %arg4[%c0_13, %c0_14] : memref<8x128xf32, #tpu.memory_space<vmem>>, vector<8x128xf32>
    tpu.vector_store %arg4[%c0_13, %c0_14], %34 {strides = array<i32>} : memref<8x128xf32, #tpu.memory_space<vmem>>, vector<8x128xf32>,
    return
  }
  func.func @transform_0(%arg0: i32) -> (i32, i32) {
    %c0_i32 = arith.constant 0 : i32
    %c0_i32_0 = arith.constant 0 : i32
    return %arg0, %c0_i32 : i32, i32
  }
  func.func @transform_1(%arg0: i32) -> (i32, i32) {
    %c0_i32 = arith.constant 0 : i32
    %c0_i32_0 = arith.constant 0 : i32
    %c0_i32_1 = arith.constant 0 : i32
    return %c0_i32, %c0_i32_0 : i32, i32
  }
  func.func @transform_2(%arg0: i32) -> (i32, i32) {
    %c0_i32 = arith.constant 0 : i32
    %c0_i32_0 = arith.constant 0 : i32
    %c0_i32_1 = arith.constant 0 : i32
    return %c0_i32, %c0_i32_0 : i32, i32
  }
  func.func @transform_3(%arg0: i32) -> (i32, i32) {
    %c0_i32 = arith.constant 0 : i32
    %c0_i32_0 = arith.constant 0 : i32
    return %arg0, %c0_i32 : i32, i32
  }
}

</mosaic_0001>

<llo_original>
// kernel: tpu_custom_call.1
$region0: #{tpu_custom_call.1}
  #allocation0 [shape = 'u32[]', space=smem, size = 0x4, offset = 0x4, fixed_abs, tag = 'smem constant byte address 0x4 - core index']
  #allocation1 [shape = 'u32[144,128]{1,0:T(1,128)}', space=vmem, size = 0x12000, scoped, tag = 'internal scratch']
  %s0 = inlined_call_operand.hbm [shape: f32[18,128], index: 0, kind: input, shape index: {}]
  %s1 = inlined_call_operand.vmem [shape: f32[1,128], index: 1, kind: input, shape index: {}]
  %s2 = inlined_call_operand.vmem [shape: f32[1,128], index: 2, kind: input, shape index: {}]
  %s3 = inlined_call_operand.hbm [shape: f32[18,128], index: 3, kind: output, shape index: {}]
  %s4 = sld [smem:[#allocation0]]
  $region49: #{tpu_custom_call.1} parent=0
    _
  %s6 = ssub.s32 1, %s4
  %s7 = scalar_select 0, %s6, %s4
  $region1: #{tpu_custom_call.1} parent=0
    #allocation2 [shape = 'u8[8192]{0}', space=vmem, size = 0x2000, scoped, tag = 'input window, operand 0']
    #allocation3 [shape = 's32[2]{0}', space=sflag, size = 0x8, scoped, tag = 'scoped memory for tpu_custom_call.1']
    #allocation4 [shape = 's32[2]{0}', space=sflag, size = 0x8, scoped, tag = 'scoped memory for tpu_custom_call.1']
    #allocation5 [shape = 'u8[8192]{0}', space=vmem, size = 0x2000, scoped, tag = 'output window, operand 0']
    %8 = vsyncpa [#allocation3], 0
    %s9 = scalar_lea.sflag [#allocation3], 1
    %10 = vsyncpa %s9, 0
    %11 = vsyncpa [#allocation4], 0
    %s12 = scalar_lea.sflag [#allocation4], 1
    %13 = vsyncpa %s12, 0
    loop: start=0, step=1, limit=5
    $region2: #{tpu_custom_call.1} parent=1 // loop_pre_header
      _
    $region3: #{tpu_custom_call.1} parent=1 // loop_header
      %s15 = sphi 0, %s19
      %p16 = scmp.ge.s32.totalorder %s15, 5
      %s25 = sphi 0, %s27
      %s28 = sphi 0, %s25
      %s29 = sphi 0, %s28
      %s45 = sphi 0, %s29
      %s49 = sphi 0, %s49
      %s51 = sphi 0, %s49
      %s52 = sphi 0, %s51
      %s66 = sphi 0, %s52
      %s70 = sphi 0, %s70
      %s72 = sphi 0, %s70
      %s73 = sphi 0, %s72
      %s87 = sphi 0, %s73
      %s93 = sphi 0, %s95
      %s96 = sphi 0, %s93
      %s97 = sphi 0, %s96
      %s113 = sphi 0, %s97
    $region4: #{tpu_custom_call.1} parent=1 // loop_header_branch
      %18 = sbr.rel (%p16) target = $region8
    $region5: #{tpu_custom_call.1} parent=1 // loop_body
      %s20 = ssub.s32 %s15, 1
      %s21 = ssub.s32 %s15, 2
      %s22 = sadd.s32 %s15, 1
      %s23 = ssub.s32 %s15, %s22
      %p24 = scmp.eq.s32.totalorder %s23, 0
      %s26 = sadd.s32 %s25, 1
      %s27 = scalar_select %p24, %s25, %s26
      %p30 = pneg %p24
      %p31 = scmp.eq.s32.totalorder %s15, 2
      %p32 = por %p30, %p31
      %p33 = scmp.ne.s32.totalorder %s25, %s28
      %p34 = scmp.eq.s32.totalorder %s15, 0
      %p35 = por %p33, %p34
      %p36 = scmp.ne.s32.totalorder %s25, %s28
      %p37 = scmp.eq.s32.totalorder %s20, 2
      %p38 = por %p36, %p37
      %p39 = scmp.ne.s32.totalorder %s28, %s29
      %p40 = scmp.eq.s32.totalorder %s20, 0
      %p41 = por %p39, %p40
      %p42 = scmp.ne.s32.totalorder %s28, %s29
      %p43 = scmp.eq.s32.totalorder %s21, 2
      %p44 = por %p42, %p43
      %p46 = scmp.ne.s32.totalorder %s29, %s45
      %p47 = scmp.eq.s32.totalorder %s21, 0
      %p48 = por %p46, %p47
      %s50 = sadd.s32 %s49, 1
      %p53 = scmp.eq.s32.totalorder %s15, 2
      %p54 = scmp.ne.s32.totalorder %s49, %s51
      %p55 = scmp.eq.s32.totalorder %s15, 0
      %p56 = por %p54, %p55
      %p57 = scmp.ne.s32.totalorder %s49, %s51
      %p58 = scmp.eq.s32.totalorder %s20, 2
      %p59 = por %p57, %p58
      %p60 = scmp.ne.s32.totalorder %s51, %s52
      %p61 = scmp.eq.s32.totalorder %s20, 0
      %p62 = por %p60, %p61
      %p63 = scmp.ne.s32.totalorder %s51, %s52
      %p64 = scmp.eq.s32.totalorder %s21, 2
      %p65 = por %p63, %p64
      %p67 = scmp.ne.s32.totalorder %s52, %s66
      %p68 = scmp.eq.s32.totalorder %s21, 0
      %p69 = por %p67, %p68
      %s71 = sadd.s32 %s70, 1
      %p74 = scmp.eq.s32.totalorder %s15, 2
      %p75 = scmp.ne.s32.totalorder %s70, %s72
      %p76 = scmp.eq.s32.totalorder %s15, 0
      %p77 = por %p75, %p76
      %p78 = scmp.ne.s32.totalorder %s70, %s72
      %p79 = scmp.eq.s32.totalorder %s20, 2
      %p80 = por %p78, %p79
      %p81 = scmp.ne.s32.totalorder %s72, %s73
      %p82 = scmp.eq.s32.totalorder %s20, 0
      %p83 = por %p81, %p82
      %p84 = scmp.ne.s32.totalorder %s72, %s73
      %p85 = scmp.eq.s32.totalorder %s21, 2
      %p86 = por %p84, %p85
      %p88 = scmp.ne.s32.totalorder %s73, %s87
      %p89 = scmp.eq.s32.totalorder %s21, 0
      %p90 = por %p88, %p89
      %s91 = ssub.s32 %s15, %s22
      %p92 = scmp.eq.s32.totalorder %s91, 0
      %s94 = sadd.s32 %s93, 1
      %s95 = scalar_select %p92, %s93, %s94
      %p98 = pneg %p92
      %p99 = scmp.eq.s32.totalorder %s15, 2
      %p100 = por %p98, %p99
      %p101 = scmp.ne.s32.totalorder %s93, %s96
      %p102 = scmp.eq.s32.totalorder %s15, 0
      %p103 = por %p101, %p102
      %p104 = scmp.ne.s32.totalorder %s93, %s96
      %p105 = scmp.eq.s32.totalorder %s20, 2
      %p106 = por %p104, %p105
      %p107 = scmp.ne.s32.totalorder %s96, %s97
      %p108 = scmp.eq.s32.totalorder %s20, 0
      %p109 = por %p107, %p108
      %p110 = scmp.ne.s32.totalorder %s96, %s97
      %p111 = scmp.eq.s32.totalorder %s21, 2
      %p112 = por %p110, %p111
      %p114 = scmp.ne.s32.totalorder %s97, %s113
      %p115 = scmp.eq.s32.totalorder %s21, 0
      %p116 = por %p114, %p115
      %p117 = scmp.le.s32.totalorder 1, %s15
      %p118 = scmp.lt.s32.totalorder %s15, 4
      %p119 = pnand %p117, %p118
      %p120 = pneg %p119
      // Predicated region
      $region9: #{tpu_custom_call.1} parent=5 // pred_check
        _
      $region10: #{tpu_custom_call.1} parent=5 // pred_check_branch
        %122 = sbr.rel (%p119) target = $region12
      $region11: #{tpu_custom_call.1} parent=5 // pred_region
        %s123 = ssub.s32 %s15, 1
        // Predicated region
        $region13: #{tpu_custom_call.1} parent=11 // pred_check
          %p124 = pneg %p62
        $region14: #{tpu_custom_call.1} parent=11 // pred_check_branch
          %126 = sbr.rel (%p124) target = $region16
        $region15: #{tpu_custom_call.1} parent=11 // pred_region
          _
        $region16: #{tpu_custom_call.1} parent=11 // pred_fallthru
          _
        // Predicated region
        $region17: #{tpu_custom_call.1} parent=11 // pred_check
          %p127 = pneg %p83
        $region18: #{tpu_custom_call.1} parent=11 // pred_check_branch
          %129 = sbr.rel (%p127) target = $region20
        $region19: #{tpu_custom_call.1} parent=11 // pred_region
          _
        $region20: #{tpu_custom_call.1} parent=11 // pred_fallthru
          _
      $region12: #{tpu_custom_call.1} parent=5 // pred_fallthru
        _
      %p130 = scmp.lt.s32.totalorder %s15, 3
      // Predicated region
      $region21: #{tpu_custom_call.1} parent=5 // pred_check
        %p131 = pneg %p130
      $region22: #{tpu_custom_call.1} parent=5 // pred_check_branch
        %133 = sbr.rel (%p131) target = $region24
      $region23: #{tpu_custom_call.1} parent=5 // pred_region
        // Predicated region
        $region25: #{tpu_custom_call.1} parent=23 // pred_check
          %p134 = pneg %p35
        $region26: #{tpu_custom_call.1} parent=23 // pred_check_branch
          %136 = sbr.rel (%p134) target = $region28
        $region27: #{tpu_custom_call.1} parent=23 // pred_region
          %s137 = sand.u32 %s25, 1
          %s138 = scalar_lea.sflag [#allocation3], %s137
          %s139 = sand.u32 %s25, 1
          %s140 = smul.addr %s139, 8
          %s141 = scalar_lea.vmem [#allocation2], %s140
          %s143 = ssub.s32 128, 128
          %144 = vsyncadd %s138, %s143
          %s145 = smul.addr %s15, 128
          %s146 = scalar_lea.hbm %s0, %s145
          %s148 = sshll.u32 %s141, 4
          %s149 = int_to_ptr.vmem [resolvable:$true] %s148
          %151 = dma.hbm_to_vmem [thread:$0]  %s146, 128, %s149, %s138
        $region28: #{tpu_custom_call.1} parent=23 // pred_fallthru
          _
      $region24: #{tpu_custom_call.1} parent=5 // pred_fallthru
        _
      %p152 = scmp.le.s32.totalorder 1, %s15
      %p153 = scmp.lt.s32.totalorder %s15, 4
      %p154 = pnand %p152, %p153
      %p155 = pneg %p154
      // Predicated region
      $region29: #{tpu_custom_call.1} parent=5 // pred_check
        _
      $region30: #{tpu_custom_call.1} parent=5 // pred_check_branch
        %157 = sbr.rel (%p154) target = $region32
      $region31: #{tpu_custom_call.1} parent=5 // pred_region
        %s158 = ssub.s32 %s15, 1
        %s159 = sand.u32 %s28, 1
        %s160 = scalar_lea.sflag [#allocation3], %s159
        %s161 = sand.u32 %s28, 1
        %s162 = smul.addr %s161, 8
        %s163 = scalar_lea.vmem [#allocation2], %s162
        // Predicated region
        $region33: #{tpu_custom_call.1} parent=31 // pred_check
          %p164 = pneg %p41
        $region34: #{tpu_custom_call.1} parent=31 // pred_check_branch
          %166 = sbr.rel (%p164) target = $region36
        $region35: #{tpu_custom_call.1} parent=31 // pred_region
          %167 = dma.done %s160, 128
        $region36: #{tpu_custom_call.1} parent=31 // pred_fallthru
          _
        %s168 = sand.u32 %s28, 1
        %s169 = scalar_lea.sflag [#allocation3], %s168
        %s170 = sand.u32 %s28, 1
        %s171 = smul.addr %s170, 8
        %s172 = scalar_lea.vmem [#allocation2], %s171
        %p173 = pneg %p41
        %p174 = pneg %p38
        %p175 = pneg %p62
        %p176 = pneg %p59
        %p177 = pneg %p83
        %p178 = pneg %p80
        %p179 = pneg %p109
        %p180 = pneg %p106
        %s181 = sand.u32 %s96, 1
        %s182 = scalar_lea.sflag [#allocation4], %s181
        %s183 = sand.u32 %s96, 1
        %s184 = smul.addr %s183, 8
        %s185 = scalar_lea.vmem [#allocation5], %s184
        %v186 = vld [vmem:[%s163] sm:$0xff]
        %v187 = vld [vmem:[%s1] sm:$0x1]
        %v188 = vld [vmem:[%s2] sm:$0x1]
        %189 = vadd.xlane.f32.xlu0 %v186
        %v190 = vpop.xlane.xlu0 %189
        %v191 = vrcp.pop 128.0
        %v192 = vmul.f32 %v190, %v191
        %v193 = vmul.f32 %v186, %v186
        %194 = vadd.xlane.f32.xlu0 %v193
        %v195 = vpop.xlane.xlu0 %194
        %v196 = vmul.f32 %v195, %v191
        %v197 = vmul.f32 %v192, %v192
        %v198 = vsub.f32 %v196, %v197
        %v199 = vmax.f32 %v198, 0.0
        %v200 = vsub.f32 %v186, %v192
        %v201 = vadd.f32 %v199, 1e-05
        %v202 = vrsqrt.pop %v201
        %v203 = vmul.f32 %v200, %v202
        %v205 = vlaneseq
        %v206 = vshrl.u32 %v205, 7
        %v207 = vsub.s32 0, %v206
        %v208 = vrot.slane %v187, %v207
        %v210 = vmul.f32 %v203, %v208
        %v212 = vlaneseq
        %v213 = vshrl.u32 %v212, 7
        %v214 = vsub.s32 0, %v213
        %v215 = vrot.slane %v188, %v214
        %v217 = vadd.f32 %v210, %v215
        %v218 = vmul.f32 %v217, 0.5
        %v219 = vmul.f32 %v217, 0.70710677
        %v220 = verf.f32.pop %v219
        %v221 = vadd.f32 %v220, 1.0
        %v222 = vmul.f32 %v218, %v221
        %223 = vst [vmem:[%s185] sm:$0xff] %v222
        %s224 = sand.u32 %s96, 1
        %s225 = scalar_lea.sflag [#allocation4], %s224
        %s226 = sand.u32 %s96, 1
        %s227 = smul.addr %s226, 8
        %s228 = scalar_lea.vmem [#allocation5], %s227
        // Predicated region
        $region37: #{tpu_custom_call.1} parent=31 // pred_check
          %p229 = pneg %p106
        $region38: #{tpu_custom_call.1} parent=31 // pred_check_branch
          %231 = sbr.rel (%p229) target = $region40
        $region39: #{tpu_custom_call.1} parent=31 // pred_region
          %s233 = ssub.s32 128, 128
          %234 = vsyncadd %s225, %s233
          %s235 = smul.addr %s20, 128
          %s236 = scalar_lea.hbm %s3, %s235
          %s238 = sshll.u32 %s228, 4
          %s239 = int_to_ptr.vmem [resolvable:$true] %s238
          %241 = dma.vmem_to_hbm [thread:$0]  %s239, 128, %s236, %s225
        $region40: #{tpu_custom_call.1} parent=31 // pred_fallthru
          _
      $region32: #{tpu_custom_call.1} parent=5 // pred_fallthru
        _
      %p242 = scmp.le.s32.totalorder 2, %s15
      // Predicated region
      $region41: #{tpu_custom_call.1} parent=5 // pred_check
        %p243 = pneg %p242
      $region42: #{tpu_custom_call.1} parent=5 // pred_check_branch
        %245 = sbr.rel (%p243) target = $region44
      $region43: #{tpu_custom_call.1} parent=5 // pred_region
        %s246 = ssub.s32 %s15, 2
        // Predicated region
        $region45: #{tpu_custom_call.1} parent=43 // pred_check
          %p247 = pneg %p112
        $region46: #{tpu_custom_call.1} parent=43 // pred_check_branch
          %249 = sbr.rel (%p247) target = $region48
        $region47: #{tpu_custom_call.1} parent=43 // pred_region
          %s250 = sand.u32 %s97, 1
          %s251 = scalar_lea.sflag [#allocation4], %s250
          %s252 = sand.u32 %s97, 1
          %s253 = smul.addr %s252, 8
          %s254 = scalar_lea.vmem [#allocation5], %s253
          %255 = dma.done %s251, 128
        $region48: #{tpu_custom_call.1} parent=43 // pred_fallthru
          _
      $region44: #{tpu_custom_call.1} parent=5 // pred_fallthru
        _
    $region6: #{tpu_custom_call.1} parent=1 // loop_footer
      %s19 = sadd.s32 1, %s15
    $region7: #{tpu_custom_call.1} parent=1 // loop_footer_branch
      %14 = sbr.rel target = $region3
    $region8: #{tpu_custom_call.1} parent=1 // loop_exit
      _
    %256 = vsyncpa [#allocation3], 1
    %s257 = scalar_lea.sflag [#allocation3], 1
    %258 = vsyncpa %s257, 1
    %259 = vsyncpa [#allocation4], 1
    %s260 = scalar_lea.sflag [#allocation4], 1
    %261 = vsyncpa %s260, 1

</llo_original>
